<compile_context>
chip_gen: v7x
topology: tpu7x:2x2x1
jax: 0.10.0
libtpu: 0.0.40
codegen_flags: <defaults>
</compile_context>

<pallas_src>
import functools

import jax
import jax.numpy as jnp
from jax import lax
from jax.experimental import pallas as pl
from jax.experimental.pallas import tpu as pltpu


# ----------------------------- helpers -----------------------------

def _pick_tile(dim, desired, granule):
    """Largest tile <= desired that divides `dim` and is a multiple of `granule`;
    falls back to the full dimension (always a legal BlockSpec block)."""
    t = min(desired, dim)
    t -= t % granule
    while t >= granule:
        if dim % t == 0:
            return t
        t -= granule
    return dim


# ----------------------------- tiled linear (fused QKV / o_proj) -----------------------------

def _linear_kernel(*refs, has_bias):
    if has_bias:
        x_ref, w_ref, b_ref, o_ref, acc_ref = refs
    else:
        x_ref, w_ref, o_ref, acc_ref = refs
        b_ref = None

    @pl.when(pl.program_id(2) == 0)
    def _init():
        acc_ref[...] = jnp.zeros_like(acc_ref)

    acc_ref[...] += jnp.dot(x_ref[...], w_ref[...],
                            preferred_element_type=jnp.float32)

    @pl.when(pl.program_id(2) == pl.num_programs(2) - 1)
    def _finalize():
        acc = acc_ref[...]
        if has_bias:
            acc = acc + b_ref[...]
        o_ref[...] = acc.astype(o_ref.dtype)


def pallas_linear(x2d, w_t, bias=None, *, tm=256, tn=256, tk=512,
                  mxu_dtype=None, out_dtype=None):
    """y = x2d @ w_t (+ bias).  x2d: (N, K), w_t: (K, OUT), bias: (OUT,) or None."""
    n, kdim = x2d.shape
    out = w_t.shape[1]
    out_dtype = out_dtype if out_dtype is not None else x2d.dtype
    if mxu_dtype is not None:
        x2d = x2d.astype(mxu_dtype)
        w_t = w_t.astype(mxu_dtype)

    tm = _pick_tile(n, tm, 8)       # sublane granule
    tn = _pick_tile(out, tn, 128)   # lane granule
    tk = _pick_tile(kdim, tk, 128)
    grid = (n // tm, out // tn, kdim // tk)

    in_specs = [
        pl.BlockSpec((tm, tk), lambda i, j, k: (i, k)),
        pl.BlockSpec((tk, tn), lambda i, j, k: (k, j)),
    ]
    args = [x2d, w_t]
    if bias is not None:
        in_specs.append(pl.BlockSpec((1, tn), lambda i, j, k: (0, j)))
        args.append(bias.reshape(1, out).astype(jnp.float32))

    return pl.pallas_call(
        functools.partial(_linear_kernel, has_bias=bias is not None),
        out_shape=jax.ShapeDtypeStruct((n, out), out_dtype),
        grid=grid,
        in_specs=in_specs,
        out_specs=pl.BlockSpec((tm, tn), lambda i, j, k: (i, j)),
        scratch_shapes=[pltpu.VMEM((tm, tn), jnp.float32)],
        compiler_params=pltpu.CompilerParams(
            dimension_semantics=("parallel", "parallel", "arbitrary")),
    )(*args)


# ----------------------------- flash attention (hot path) -----------------------------

def _flash_attn_kernel(q_ref, k_ref, v_ref, o_ref, m_sc, l_sc, acc_sc,
                       *, group, q_block, kv_block, head_dim):
    kv_idx = pl.program_id(3)
    q_start = pl.program_id(2) * q_block
    k_start = kv_idx * kv_block
    rows = group * q_block

    @pl.when(kv_idx == 0)
    def _init():
        m_sc[...] = jnp.full_like(m_sc, -jnp.inf)
        l_sc[...] = jnp.zeros_like(l_sc)
        acc_sc[...] = jnp.zeros_like(acc_sc)

    def _update(masked):
        q = q_ref[0].reshape(rows, head_dim)   # (group*tq, Dh), pre-scaled by 1/sqrt(Dh)
        k = k_ref[0, 0]                        # (tkv, Dh)
        v = v_ref[0, 0]                        # (tkv, Dh)
        # QK^T without an explicit transpose: contract the Dh axes on the MXU.
        s = lax.dot_general(q, k, (((1,), (1,)), ((), ())),
                            preferred_element_type=jnp.float32)  # (group*tq, tkv)
        if masked:  # only diagonal tiles pay for the iota/compare/select
            r = q_start + (lax.broadcasted_iota(jnp.int32, (rows, kv_block), 0) % q_block)
            c = k_start + lax.broadcasted_iota(jnp.int32, (rows, kv_block), 1)
            s = jnp.where(r >= c, s, jnp.finfo(jnp.float32).min)
        m_prev = m_sc[...]
        m_new = jnp.maximum(m_prev, jnp.max(s, axis=-1, keepdims=True))
        alpha = jnp.exp(m_prev - m_new)
        p = jnp.exp(s - m_new)
        l_sc[...] = alpha * l_sc[...] + jnp.sum(p, axis=-1, keepdims=True)
        acc_sc[...] = alpha * acc_sc[...] + jnp.dot(
            p.astype(v.dtype), v, preferred_element_type=jnp.float32)
        m_sc[...] = m_new

    # Classify the tile against the causal diagonal; fully-masked tiles do no compute.
    @pl.when(k_start + kv_block <= q_start)
    def _below_diag():
        _update(masked=False)

    @pl.when((k_start <= q_start + q_block - 1) & (k_start + kv_block > q_start))
    def _on_diag():
        _update(masked=True)

    @pl.when(kv_idx == pl.num_programs(3) - 1)
    def _finalize():
        inv_l = pl.reciprocal(l_sc[...], approx=True)
        o_ref[0] = (acc_sc[...] * inv_l).reshape(
            group, q_block, head_dim).astype(o_ref.dtype)


def pallas_flash_attention(q, k, v, *, num_kv_groups, q_block=256, kv_block=512,
                           mxu_dtype=None):
    """q: (B, H, S, Dh) already scaled by 1/sqrt(Dh); k, v: (B, H_kv, S, Dh)."""
    b, h, s, d = q.shape
    hkv = k.shape[1]
    group = num_kv_groups
    assert h == hkv * group
    out_dtype = q.dtype
    if mxu_dtype is not None:
        q = q.astype(mxu_dtype)
        k = k.astype(mxu_dtype)
        v = v.astype(mxu_dtype)

    tq = _pick_tile(s, q_block, 8)
    tkv = _pick_tile(s, kv_block, 8)
    grid = (b, hkv, s // tq, s // tkv)

    q_map = lambda bi, hi, qi, ki: (bi, hi, qi, 0)  # head block of size `group` at kv-head hi

    def kv_map(bi, hi, qi, ki):
        # Clamp to the last KV tile the causal mask can touch for this Q tile so
        # fully-masked KV steps reuse the previously fetched block (no extra DMA).
        last_needed = (qi * tq + tq - 1) // tkv
        return (bi, hi, jnp.minimum(ki, last_needed), 0)

    kernel = functools.partial(_flash_attn_kernel, group=group, q_block=tq,
                               kv_block=tkv, head_dim=d)
    return pl.pallas_call(
        kernel,
        out_shape=jax.ShapeDtypeStruct((b, h, s, d), out_dtype),
        grid=grid,
        in_specs=[
            pl.BlockSpec((1, group, tq, d), q_map),
            pl.BlockSpec((1, 1, tkv, d), kv_map),
            pl.BlockSpec((1, 1, tkv, d), kv_map),
        ],
        out_specs=pl.BlockSpec((1, group, tq, d), q_map),
        scratch_shapes=[
            pltpu.VMEM((group * tq, 1), jnp.float32),   # running max
            pltpu.VMEM((group * tq, 1), jnp.float32),   # running denom
            pltpu.VMEM((group * tq, d), jnp.float32),   # output accumulator
        ],
        compiler_params=pltpu.CompilerParams(
            dimension_semantics=("parallel", "parallel", "parallel", "arbitrary")),
    )(q, k, v)


# ----------------------------- eager attention (debug path, emits weights) -----------------------------

def _eager_attn_kernel(q_ref, k_ref, v_ref, o_ref, w_ref):
    q = q_ref[0, 0]   # (S, Dh), pre-scaled
    k = k_ref[0, 0]
    v = v_ref[0, 0]
    s = lax.dot_general(q, k, (((1,), (1,)), ((), ())),
                        preferred_element_type=jnp.float32)
    n = s.shape[0]
    r = lax.broadcasted_iota(jnp.int32, (n, n), 0)
    c = lax.broadcasted_iota(jnp.int32, (n, n), 1)
    s = jnp.where(r >= c, s, jnp.finfo(jnp.float32).min)
    m = jnp.max(s, axis=-1, keepdims=True)
    e = jnp.exp(s - m)
    p = e * pl.reciprocal(jnp.sum(e, axis=-1, keepdims=True), approx=True)
    w_ref[0, 0] = p.astype(w_ref.dtype)
    o_ref[0, 0] = jnp.dot(p.astype(v.dtype), v,
                          preferred_element_type=jnp.float32).astype(o_ref.dtype)


def pallas_eager_attention(q, k, v, *, num_kv_groups, mxu_dtype=None):
    b, h, s, d = q.shape
    group = num_kv_groups
    out_dtype = q.dtype
    if mxu_dtype is not None:
        q = q.astype(mxu_dtype)
        k = k.astype(mxu_dtype)
        v = v.astype(mxu_dtype)
    q_map = lambda bi, hi: (bi, hi, 0, 0)
    kv_map = lambda bi, hi: (bi, hi // group, 0, 0)   # GQA head sharing via index_map
    return pl.pallas_call(
        _eager_attn_kernel,
        out_shape=(jax.ShapeDtypeStruct((b, h, s, d), out_dtype),
                   jax.ShapeDtypeStruct((b, h, s, s), out_dtype)),
        grid=(b, h),
        in_specs=[pl.BlockSpec((1, 1, s, d), q_map),
                  pl.BlockSpec((1, 1, s, d), kv_map),
                  pl.BlockSpec((1, 1, s, d), kv_map)],
        out_specs=(pl.BlockSpec((1, 1, s, d), q_map),
                   pl.BlockSpec((1, 1, s, s), q_map)),
        compiler_params=pltpu.CompilerParams(
            dimension_semantics=("parallel", "parallel")),
    )(q, k, v)


# ----------------------------- JAX glue (RoPE, reshapes) -----------------------------

def _rotate_half_interleaved(x):
    x1 = x[..., 0::2]
    x2 = x[..., 1::2]
    return jnp.stack([-x2, x1], axis=-1).reshape(x.shape)


def apply_rotary_pos_emb(q, k, cos, sin, unsqueeze_dim=1):
    """GLM interleaved partial rotary; cos/sin: (B, S, rot_dim)."""
    cos = jnp.expand_dims(cos, unsqueeze_dim)
    sin = jnp.expand_dims(sin, unsqueeze_dim)
    half = cos.shape[-1] // 2
    cos_i = jnp.repeat(cos[..., :half], 2, axis=-1)
    sin_i = jnp.repeat(sin[..., :half], 2, axis=-1)
    rotary_dim = cos_i.shape[-1]

    q_rot, q_pass = q[..., :rotary_dim], q[..., rotary_dim:]
    k_rot, k_pass = k[..., :rotary_dim], k[..., rotary_dim:]
    q_emb = jnp.concatenate(
        [q_rot * cos_i + _rotate_half_interleaved(q_rot) * sin_i, q_pass], axis=-1)
    k_emb = jnp.concatenate(
        [k_rot * cos_i + _rotate_half_interleaved(k_rot) * sin_i, k_pass], axis=-1)
    return q_emb, k_emb


def glm_attention_forward(params, hidden_states, cos, sin, *, num_heads,
                          num_kv_heads, head_dim, output_attentions=False,
                          mxu_dtype=jnp.bfloat16,
                          q_block=256, kv_block=512,
                          lin_tm=256, lin_tn=256, lin_tk=512):
    b, s, hidden = hidden_states.shape
    scaling = head_dim ** -0.5
    x2d = hidden_states.reshape(b * s, hidden)

    # Fused QKV projection: a single tiled matmul, hidden_states DMA'd once.
    q_out = num_heads * head_dim
    kv_out = num_kv_heads * head_dim
    w_qkv_t = jnp.concatenate([params["wq"].T, params["wk"].T, params["wv"].T], axis=1)
    b_qkv = jnp.concatenate([params["bq"], params["bk"], params["bv"]])
    qkv = pallas_linear(x2d, w_qkv_t, b_qkv, tm=lin_tm, tn=lin_tn, tk=lin_tk,
                        mxu_dtype=mxu_dtype, out_dtype=hidden_states.dtype)
    q2d = qkv[:, :q_out]
    k2d = qkv[:, q_out:q_out + kv_out]
    v2d = qkv[:, q_out + kv_out:]

    q = q2d.reshape(b, s, num_heads, head_dim).transpose(0, 2, 1, 3)
    k = k2d.reshape(b, s, num_kv_heads, head_dim).transpose(0, 2, 1, 3)
    v = v2d.reshape(b, s, num_kv_heads, head_dim).transpose(0, 2, 1, 3)

    # Partial interleaved rotary (kept as tiny elementwise JAX glue).
    q, k = apply_rotary_pos_emb(q, k, cos, sin)
    # Fold 1/sqrt(Dh) into q: O(S*Dh) multiplies instead of O(S^2).
    q = q * scaling

    group = num_heads // num_kv_heads
    if output_attentions:
        attn_out, attn_weights = pallas_eager_attention(
            q, k, v, num_kv_groups=group, mxu_dtype=mxu_dtype)
    else:
        attn_out = pallas_flash_attention(
            q, k, v, num_kv_groups=group, q_block=q_block, kv_block=kv_block,
            mxu_dtype=mxu_dtype)
        attn_weights = None

    # transpose(1,2) + merge heads, then o_proj (no bias).
    attn_out = attn_out.transpose(0, 2, 1, 3).reshape(b * s, num_heads * head_dim)
    out = pallas_linear(attn_out, params["wo"].T, None, tm=lin_tm, tn=lin_tn,
                        tk=lin_tk, mxu_dtype=mxu_dtype,
                        out_dtype=hidden_states.dtype)
    return out.reshape(b, s, hidden), attn_weights


# ----------------------------- pure-JAX reference -----------------------------

def glm_attention_reference(params, hidden_states, cos, sin, *, num_heads,
                            num_kv_heads, head_dim):
    b, s, _ = hidden_states.shape
    q = hidden_states @ params["wq"].T + params["bq"]
    k = hidden_states @ params["wk"].T + params["bk"]
    v = hidden_states @ params["wv"].T + params["bv"]
    q = q.reshape(b, s, num_heads, head_dim).transpose(0, 2, 1, 3)
    k = k.reshape(b, s, num_kv_heads, head_dim).transpose(0, 2, 1, 3)
    v = v.reshape(b, s, num_kv_heads, head_dim).transpose(0, 2, 1, 3)
    q, k = apply_rotary_pos_emb(q, k, cos, sin)
    g = num_heads // num_kv_heads
    k = jnp.repeat(k, g, axis=1)
    v = jnp.repeat(v, g, axis=1)
    scores = jnp.einsum("bhqd,bhkd->bhqk", q, k) * head_dim ** -0.5
    mask = jnp.tril(jnp.ones((s, s), bool))
    scores = jnp.where(mask, scores, jnp.finfo(scores.dtype).min)
    w = jax.nn.softmax(scores, axis=-1)
    out = jnp.einsum("bhqk,bhkd->bhqd", w, v)
    out = out.transpose(0, 2, 1, 3).reshape(b, s, num_heads * head_dim)
    return out @ params["wo"].T, w


# ----------------------------- main -----------------------------

if __name__ == "__main__":
    # Small GlmConfig-like setup (S=16 with 8-sized tiles exercises multi-tile flash).
    B, S, HIDDEN = 2, 16, 32
    NUM_HEADS, NUM_KV_HEADS = 4, 2
    HEAD_DIM = HIDDEN // NUM_HEADS                 # 8
    ROT_DIM = HEAD_DIM // 2                        # partial_rotary_factor = 0.5
    ROPE_THETA = 10000.0

    key = jax.random.PRNGKey(0)
    ks = jax.random.split(key, 8)
    scale = 0.05
    params = {
        "wq": scale * jax.random.normal(ks[0], (NUM_HEADS * HEAD_DIM, HIDDEN), jnp.float32),
        "bq": scale * jax.random.normal(ks[1], (NUM_HEADS * HEAD_DIM,), jnp.float32),
        "wk": scale * jax.random.normal(ks[2], (NUM_KV_HEADS * HEAD_DIM, HIDDEN), jnp.float32),
        "bk": scale * jax.random.normal(ks[3], (NUM_KV_HEADS * HEAD_DIM,), jnp.float32),
        "wv": scale * jax.random.normal(ks[4], (NUM_KV_HEADS * HEAD_DIM, HIDDEN), jnp.float32),
        "bv": scale * jax.random.normal(ks[5], (NUM_KV_HEADS * HEAD_DIM,), jnp.float32),
        "wo": scale * jax.random.normal(ks[6], (HIDDEN, NUM_HEADS * HEAD_DIM), jnp.float32),
    }
    hidden_states = jax.random.normal(ks[7], (B, S, HIDDEN), jnp.float32)

    # position_embeddings (cos, sin), shape (B, S, ROT_DIM), as produced by GlmRotaryEmbedding.
    pos = jnp.arange(S, dtype=jnp.float32)
    inv_freq = 1.0 / (ROPE_THETA ** (jnp.arange(0, ROT_DIM, 2, dtype=jnp.float32) / ROT_DIM))
    freqs = pos[:, None] * inv_freq[None, :]
    emb = jnp.concatenate([freqs, freqs], axis=-1)
    cos = jnp.broadcast_to(jnp.cos(emb)[None], (B, S, ROT_DIM))
    sin = jnp.broadcast_to(jnp.sin(emb)[None], (B, S, ROT_DIM))

    fwd = functools.partial(
        glm_attention_forward, num_heads=NUM_HEADS, num_kv_heads=NUM_KV_HEADS,
        head_dim=HEAD_DIM, q_block=8, kv_block=8, lin_tm=8)  # small tiles to exercise the grids

    # Hot path (flash, no attention weights).
    attn_output, attn_weights = fwd(params, hidden_states, cos, sin)
    # Debug path (eager, materializes attention weights).
    attn_output_dbg, attn_weights_dbg = fwd(params, hidden_states, cos, sin,
                                            output_attentions=True)
    jax.block_until_ready((attn_output, attn_output_dbg, attn_weights_dbg))

    ref_out, ref_w = glm_attention_reference(
        params, hidden_states, cos, sin, num_heads=NUM_HEADS,
        num_kv_heads=NUM_KV_HEADS, head_dim=HEAD_DIM)

    assert attn_output.shape == (B, S, HIDDEN)
    assert attn_weights is None
    assert attn_output_dbg.shape == (B, S, HIDDEN)
    assert attn_weights_dbg.shape == (B, NUM_HEADS, S, S)
    assert jnp.allclose(attn_output, ref_out, atol=2e-2, rtol=5e-2)
    assert jnp.allclose(attn_output_dbg, ref_out, atol=2e-2, rtol=5e-2)
    assert jnp.allclose(attn_weights_dbg, ref_w, atol=2e-2, rtol=5e-2)
    print("KERNEL_OK")
</pallas_src>

<mosaic_0001>
module attributes {stable_mosaic.version = 11 : i64} {
  func.func @_linear_kernel(%arg0: i32, %arg1: i32, %arg2: i32, %arg3: memref<8x32xbf16, #tpu.memory_space<vmem>>, %arg4: memref<32x64xbf16, #tpu.memory_space<vmem>>, %arg5: memref<1x64xf32, #tpu.memory_space<vmem>>, %arg6: memref<8x64xf32, #tpu.memory_space<vmem>>, %arg7: memref<8x64xf32, #tpu.memory_space<vmem>>) attributes {dimension_semantics = [#tpu.dimension_semantics<parallel>, #tpu.dimension_semantics<parallel>, #tpu.dimension_semantics<arbitrary>], iteration_bounds = array<i64: 4, 1, 1>, scalar_prefetch = 0 : i64, scratch_operands = 1 : i64, tpu.core_type = #tpu.core_type<tc>, window_params = [{transform_indices = @transform_0, window_bounds = array<i64: 8, 32>}, {transform_indices = @transform_1, window_bounds = array<i64: 32, 64>}, {transform_indices = @transform_2, window_bounds = array<i64: 1, 64>}, {transform_indices = @transform_3, window_bounds = array<i64: 8, 64>}]} {
    %c0_i32 = arith.constant 0 : i32
    %0 = arith.cmpi eq, %arg2, %c0_i32 : i32
    %1 = arith.extui %0 : i1 to i32
    %c0_i32_0 = arith.constant 0 : i32
    %2 = arith.cmpi ne, %1, %c0_i32_0 : i32
    scf.if %2 {
      %cst_10 = arith.constant 0.000000e+00 : f32
      %12 = vector.broadcast %cst_10 : f32 to vector<8x64xf32>
      %c0_11 = arith.constant 0 : index
      %c0_12 = arith.constant 0 : index
      %13 = vector.load %arg7[%c0_11, %c0_12] : memref<8x64xf32, #tpu.memory_space<vmem>>, vector<8x64xf32>
      tpu.vector_store %arg7[%c0_11, %c0_12], %12 {strides = array<i32>} : memref<8x64xf32, #tpu.memory_space<vmem>>, vector<8x64xf32>,
    } else {
    }
    %c0 = arith.constant 0 : index
    %c0_1 = arith.constant 0 : index
    %3 = vector.load %arg7[%c0, %c0_1] : memref<8x64xf32, #tpu.memory_space<vmem>>, vector<8x64xf32>
    %c0_2 = arith.constant 0 : index
    %c0_3 = arith.constant 0 : index
    %4 = vector.load %arg3[%c0_2, %c0_3] : memref<8x32xbf16, #tpu.memory_space<vmem>>, vector<8x32xbf16>
    %c0_4 = arith.constant 0 : index
    %c0_5 = arith.constant 0 : index
    %5 = vector.load %arg4[%c0_4, %c0_5] : memref<32x64xbf16, #tpu.memory_space<vmem>>, vector<32x64xbf16>
    %cst = arith.constant dense<0.000000e+00> : vector<8x64xf32>
    %6 = tpu.matmul %4, %5, %cst {dimension_numbers = #tpu.dot_dimension_numbers<[1], [0], [0], [1], [0, 0, 1, 1], [], []>} : vector<8x32xbf16>, vector<32x64xbf16>, vector<8x64xf32> -> vector<8x64xf32>
    %7 = arith.addf %3, %6 : vector<8x64xf32>
    %c0_6 = arith.constant 0 : index
    %c0_7 = arith.constant 0 : index
    %8 = vector.load %arg7[%c0_6, %c0_7] : memref<8x64xf32, #tpu.memory_space<vmem>>, vector<8x64xf32>
    tpu.vector_store %arg7[%c0_6, %c0_7], %7 {strides = array<i32>} : memref<8x64xf32, #tpu.memory_space<vmem>>, vector<8x64xf32>,
    %c0_i32_8 = arith.constant 0 : i32
    %9 = arith.cmpi eq, %arg2, %c0_i32_8 : i32
    %10 = arith.extui %9 : i1 to i32
    %c0_i32_9 = arith.constant 0 : i32
    %11 = arith.cmpi ne, %10, %c0_i32_9 : i32
    scf.if %11 {
      %c0_10 = arith.constant 0 : index
      %c0_11 = arith.constant 0 : index
      %12 = vector.load %arg7[%c0_10, %c0_11] : memref<8x64xf32, #tpu.memory_space<vmem>>, vector<8x64xf32>
      %c0_12 = arith.constant 0 : index
      %c0_13 = arith.constant 0 : index
      %13 = vector.load %arg5[%c0_12, %c0_13] : memref<1x64xf32, #tpu.memory_space<vmem>>, vector<1x64xf32>
      %14 = vector.broadcast %13 : vector<1x64xf32> to vector<8x64xf32>
      %15 = arith.addf %12, %14 : vector<8x64xf32>
      %c0_14 = arith.constant 0 : index
      %c0_15 = arith.constant 0 : index
      %16 = vector.load %arg6[%c0_14, %c0_15] : memref<8x64xf32, #tpu.memory_space<vmem>>, vector<8x64xf32>
      tpu.vector_store %arg6[%c0_14, %c0_15], %15 {strides = array<i32>} : memref<8x64xf32, #tpu.memory_space<vmem>>, vector<8x64xf32>,
    } else {
    }
    return
  }
  func.func @transform_0(%arg0: i32, %arg1: i32, %arg2: i32) -> (i32, i32) {
    %c0_i32 = arith.constant 0 : i32
    return %arg0, %arg2 : i32, i32
  }
  func.func @transform_1(%arg0: i32, %arg1: i32, %arg2: i32) -> (i32, i32) {
    %c0_i32 = arith.constant 0 : i32
    return %arg2, %arg1 : i32, i32
  }
  func.func @transform_2(%arg0: i32, %arg1: i32, %arg2: i32) -> (i32, i32) {
    %c0_i32 = arith.constant 0 : i32
    %c0_i32_0 = arith.constant 0 : i32
    return %c0_i32, %arg1 : i32, i32
  }
  func.func @transform_3(%arg0: i32, %arg1: i32, %arg2: i32) -> (i32, i32) {
    %c0_i32 = arith.constant 0 : i32
    return %arg0, %arg1 : i32, i32
  }
}

</mosaic_0001>

<llo_original>
// kernel: tpu_custom_call.1
$region0: #{tpu_custom_call.1}
  #allocation0 [shape = 'u32[]', space=smem, size = 0x4, offset = 0x4, fixed_abs, tag = 'smem constant byte address 0x4 - core index']
  #allocation1 [shape = 'u32[144,128]{1,0:T(1,128)}', space=vmem, size = 0x12000, scoped, tag = 'internal scratch']
  #allocation2 [shape = 'f32[8,64]{1,0:T(8,128)}', space=vmem, size = 0x1000, scoped, tag = 'scratch operand']
  %s0 = inlined_call_operand.hbm [shape: bf16[32,32], index: 0, kind: input, shape index: {}]
  %s1 = inlined_call_operand.hbm [shape: bf16[32,64], index: 1, kind: input, shape index: {}]
  %s2 = inlined_call_operand.vmem [shape: f32[1,64], index: 2, kind: input, shape index: {}]
  %s3 = inlined_call_operand.hbm [shape: f32[32,64], index: 3, kind: output, shape index: {}]
  %s4 = sld [smem:[#allocation0]]
  $region61: #{tpu_custom_call.1} parent=0
    _
  %s6 = ssub.s32 1, %s4
  %s7 = scalar_select 0, %s6, %s4
  $region1: #{tpu_custom_call.1} parent=0
    #allocation3 [shape = 'u8[4096]{0}', space=vmem, size = 0x1000, scoped, tag = 'input window, operand 0']
    #allocation4 [shape = 's32[2]{0}', space=sflag, size = 0x8, scoped, tag = 'scoped memory for tpu_custom_call.1']
    #allocation5 [shape = 's32[2]{0}', space=sflag, size = 0x8, scoped, tag = 'scoped memory for tpu_custom_call.1']
    #allocation6 [shape = 'u8[8192]{0}', space=vmem, size = 0x2000, scoped, tag = 'input window, operand 1, single buffered']
    #allocation7 [shape = 's32[1]{0}', space=sflag, size = 0x4, scoped, tag = 'scoped memory for tpu_custom_call.1']
    #allocation8 [shape = 'u8[8192]{0}', space=vmem, size = 0x2000, scoped, tag = 'output window, operand 0']
    %8 = vsyncpa [#allocation4], 0
    %s9 = scalar_lea.sflag [#allocation4], 1
    %10 = vsyncpa %s9, 0
    %11 = vsyncpa [#allocation7], 0
    %12 = vsyncpa [#allocation5], 0
    %s13 = scalar_lea.sflag [#allocation5], 1
    %14 = vsyncpa %s13, 0
    loop: start=0, step=1, limit=6
    $region2: #{tpu_custom_call.1} parent=1 // loop_pre_header
      _
    $region3: #{tpu_custom_call.1} parent=1 // loop_header
      %s16 = sphi 0, %s20
      %p17 = scmp.ge.s32.totalorder %s16, 6
      %s23 = sphi 0, %s42
      %s24 = sphi 0, %s38
      %s25 = sphi 0, %s34
      %s26 = sphi 0, %s23
      %s27 = sphi 0, %s24
      %s28 = sphi 0, %s25
      %s29 = sphi 0, %s26
      %s30 = sphi 0, %s27
      %s31 = sphi 0, %s28
      %s47 = sphi 0, %s49
      %s50 = sphi 0, %s47
      %s51 = sphi 0, %s50
      %s67 = sphi 0, %s51
      %s75 = sphi 0, %s77
      %s78 = sphi 0, %s75
      %s79 = sphi 0, %s78
      %s95 = sphi 0, %s79
      %s101 = sphi 0, %s103
      %s104 = sphi 0, %s101
      %s105 = sphi 0, %s104
      %s121 = sphi 0, %s105
      %s129 = sphi 0, %s131
      %s132 = sphi 0, %s129
      %s133 = sphi 0, %s132
      %s149 = sphi 0, %s133
    $region4: #{tpu_custom_call.1} parent=1 // loop_header_branch
      %19 = sbr.rel (%p17) target = $region8
    $region5: #{tpu_custom_call.1} parent=1 // loop_body
      %s21 = ssub.s32 %s16, 1
      %s22 = ssub.s32 %s16, 2
      %s32 = sadd.s32 1, %s25
      %p33 = scmp.ge.s32.totalorder %s32, 1
      %s34 = scalar_select %p33, 0, %s32
      %s35 = sadd.s32 1, %s24
      %s36 = scalar_select %p33, %s35, %s24
      %p37 = scmp.ge.s32.totalorder %s36, 1
      %s38 = scalar_select %p37, 0, %s36
      %s39 = sadd.s32 1, %s23
      %s40 = scalar_select %p37, %s39, %s23
      %p41 = scmp.ge.s32.totalorder %s40, 4
      %s42 = scalar_select %p41, 0, %s40
      %s43 = ssub.s32 %s23, %s42
      %s44 = ssub.s32 %s25, %s34
      %s45 = sor.u32 %s43, %s44
      %p46 = scmp.eq.s32.totalorder %s45, 0
      %s48 = sadd.s32 %s47, 1
      %s49 = scalar_select %p46, %s47, %s48
      %p52 = pneg %p46
      %p53 = scmp.eq.s32.totalorder %s16, 3
      %p54 = por %p52, %p53
      %p55 = scmp.ne.s32.totalorder %s47, %s50
      %p56 = scmp.eq.s32.totalorder %s16, 0
      %p57 = por %p55, %p56
      %p58 = scmp.ne.s32.totalorder %s47, %s50
      %p59 = scmp.eq.s32.totalorder %s21, 3
      %p60 = por %p58, %p59
      %p61 = scmp.ne.s32.totalorder %s50, %s51
      %p62 = scmp.eq.s32.totalorder %s21, 0
      %p63 = por %p61, %p62
      %p64 = scmp.ne.s32.totalorder %s50, %s51
      %p65 = scmp.eq.s32.totalorder %s22, 3
      %p66 = por %p64, %p65
      %p68 = scmp.ne.s32.totalorder %s51, %s67
      %p69 = scmp.eq.s32.totalorder %s22, 0
      %p70 = por %p68, %p69
      %s71 = ssub.s32 %s25, %s34
      %s72 = ssub.s32 %s24, %s38
      %s73 = sor.u32 %s71, %s72
      %p74 = scmp.eq.s32.totalorder %s73, 0
      %s76 = sadd.s32 %s75, 1
      %s77 = scalar_select %p74, %s75, %s76
      %p80 = pneg %p74
      %p81 = scmp.eq.s32.totalorder %s16, 3
      %p82 = por %p80, %p81
      %p83 = scmp.ne.s32.totalorder %s75, %s78
      %p84 = scmp.eq.s32.totalorder %s16, 0
      %p85 = por %p83, %p84
      %p86 = scmp.ne.s32.totalorder %s75, %s78
      %p87 = scmp.eq.s32.totalorder %s21, 3
      %p88 = por %p86, %p87
      %p89 = scmp.ne.s32.totalorder %s78, %s79
      %p90 = scmp.eq.s32.totalorder %s21, 0
      %p91 = por %p89, %p90
      %p92 = scmp.ne.s32.totalorder %s78, %s79
      %p93 = scmp.eq.s32.totalorder %s22, 3
      %p94 = por %p92, %p93
      %p96 = scmp.ne.s32.totalorder %s79, %s95
      %p97 = scmp.eq.s32.totalorder %s22, 0
      %p98 = por %p96, %p97
      %s99 = ssub.s32 %s24, %s38
      %p100 = scmp.eq.s32.totalorder %s99, 0
      %s102 = sadd.s32 %s101, 1
      %s103 = scalar_select %p100, %s101, %s102
      %p106 = pneg %p100
      %p107 = scmp.eq.s32.totalorder %s16, 3
      %p108 = por %p106, %p107
      %p109 = scmp.ne.s32.totalorder %s101, %s104
      %p110 = scmp.eq.s32.totalorder %s16, 0
      %p111 = por %p109, %p110
      %p112 = scmp.ne.s32.totalorder %s101, %s104
      %p113 = scmp.eq.s32.totalorder %s21, 3
      %p114 = por %p112, %p113
      %p115 = scmp.ne.s32.totalorder %s104, %s105
      %p116 = scmp.eq.s32.totalorder %s21, 0
      %p117 = por %p115, %p116
      %p118 = scmp.ne.s32.totalorder %s104, %s105
      %p119 = scmp.eq.s32.totalorder %s22, 3
      %p120 = por %p118, %p119
      %p122 = scmp.ne.s32.totalorder %s105, %s121
      %p123 = scmp.eq.s32.totalorder %s22, 0
      %p124 = por %p122, %p123
      %s125 = ssub.s32 %s23, %s42
      %s126 = ssub.s32 %s24, %s38
      %s127 = sor.u32 %s125, %s126
      %p128 = scmp.eq.s32.totalorder %s127, 0
      %s130 = sadd.s32 %s129, 1
      %s131 = scalar_select %p128, %s129, %s130
      %p134 = pneg %p128
      %p135 = scmp.eq.s32.totalorder %s16, 3
      %p136 = por %p134, %p135
      %p137 = scmp.ne.s32.totalorder %s129, %s132
      %p138 = scmp.eq.s32.totalorder %s16, 0
      %p139 = por %p137, %p138
      %p140 = scmp.ne.s32.totalorder %s129, %s132
      %p141 = scmp.eq.s32.totalorder %s21, 3
      %p142 = por %p140, %p141
      %p143 = scmp.ne.s32.totalorder %s132, %s133
      %p144 = scmp.eq.s32.totalorder %s21, 0
      %p145 = por %p143, %p144
      %p146 = scmp.ne.s32.totalorder %s132, %s133
      %p147 = scmp.eq.s32.totalorder %s22, 3
      %p148 = por %p146, %p147
      %p150 = scmp.ne.s32.totalorder %s133, %s149
      %p151 = scmp.eq.s32.totalorder %s22, 0
      %p152 = por %p150, %p151
      %p153 = scmp.le.s32.totalorder 1, %s16
      %p154 = scmp.lt.s32.totalorder %s16, 5
      %p155 = pnand %p153, %p154
      %p156 = pneg %p155
      // Predicated region
      $region9: #{tpu_custom_call.1} parent=5 // pred_check
        _
      $region10: #{tpu_custom_call.1} parent=5 // pred_check_branch
        %158 = sbr.rel (%p155) target = $region12
      $region11: #{tpu_custom_call.1} parent=5 // pred_region
        %s159 = ssub.s32 %s16, 1
        // Predicated region
        $region13: #{tpu_custom_call.1} parent=11 // pred_check
          %p160 = pneg %p91
        $region14: #{tpu_custom_call.1} parent=11 // pred_check_branch
          %162 = sbr.rel (%p160) target = $region16
        $region15: #{tpu_custom_call.1} parent=11 // pred_region
          %s163 = smul.u32 4, %s28
          %s165 = ssub.s32 256, 256
          %166 = vsyncadd [#allocation7], %s165
          %s167 = sadd.s32 %s27, %s163
          %s168 = smul.addr %s167, 64
          %s169 = scalar_lea.hbm %s1, %s168
          %s170 = sshll.u32 [#allocation6], 4
          %s171 = int_to_ptr.vmem [resolvable:$true] %s170
          %176 = dma.hbm_to_vmem [thread:$0]  %s169, 256, %s171, [#allocation7], 64, 64, 4
        $region16: #{tpu_custom_call.1} parent=11 // pred_fallthru
          _
        // Predicated region
        $region17: #{tpu_custom_call.1} parent=11 // pred_check
          %p177 = pneg %p117
        $region18: #{tpu_custom_call.1} parent=11 // pred_check_branch
          %179 = sbr.rel (%p177) target = $region20
        $region19: #{tpu_custom_call.1} parent=11 // pred_region
          %p180 = scmp.lt.s32.totalorder %s27, 0
          %s181 = scalar_select %p180, %s27, 0
          %s182 = scalar_lea.vmem %s2, %s181
        $region20: #{tpu_custom_call.1} parent=11 // pred_fallthru
          _
      $region12: #{tpu_custom_call.1} parent=5 // pred_fallthru
        _
      %p183 = scmp.lt.s32.totalorder %s16, 4
      // Predicated region
      $region21: #{tpu_custom_call.1} parent=5 // pred_check
        %p184 = pneg %p183
      $region22: #{tpu_custom_call.1} parent=5 // pred_check_branch
        %186 = sbr.rel (%p184) target = $region24
      $region23: #{tpu_custom_call.1} parent=5 // pred_region
        // Predicated region
        $region25: #{tpu_custom_call.1} parent=23 // pred_check
          %p187 = pneg %p57
        $region26: #{tpu_custom_call.1} parent=23 // pred_check_branch
          %189 = sbr.rel (%p187) target = $region28
        $region27: #{tpu_custom_call.1} parent=23 // pred_region
          %s190 = sand.u32 %s47, 1
          %s191 = scalar_lea.sflag [#allocation4], %s190
          %s192 = sand.u32 %s47, 1
          %s193 = smul.addr %s192, 4
          %s194 = scalar_lea.vmem [#allocation3], %s193
          %s196 = ssub.s32 64, 64
          %197 = vsyncadd %s191, %s196
          %s198 = sadd.s32 %s25, %s23
          %s199 = smul.addr %s198, 64
          %s200 = scalar_lea.hbm %s0, %s199
          %s202 = sshll.u32 %s194, 4
          %s203 = int_to_ptr.vmem [resolvable:$true] %s202
          %205 = dma.hbm_to_vmem [thread:$0]  %s200, 64, %s203, %s191
        $region28: #{tpu_custom_call.1} parent=23 // pred_fallthru
          _
      $region24: #{tpu_custom_call.1} parent=5 // pred_fallthru
        _
      %p206 = scmp.le.s32.totalorder 1, %s16
      %p207 = scmp.lt.s32.totalorder %s16, 5
      %p208 = pnand %p206, %p207
      %p209 = pneg %p208
      // Predicated region
      $region29: #{tpu_custom_call.1} parent=5 // pred_check
        _
      $region30: #{tpu_custom_call.1} parent=5 // pred_check_branch
        %211 = sbr.rel (%p208) target = $region32
      $region31: #{tpu_custom_call.1} parent=5 // pred_region
        %s212 = ssub.s32 %s16, 1
        %s213 = sand.u32 %s50, 1
        %s214 = scalar_lea.sflag [#allocation4], %s213
        %s215 = sand.u32 %s50, 1
        %s216 = smul.addr %s215, 4
        %s217 = scalar_lea.vmem [#allocation3], %s216
        // Predicated region
        $region33: #{tpu_custom_call.1} parent=31 // pred_check
          %p218 = pneg %p63
        $region34: #{tpu_custom_call.1} parent=31 // pred_check_branch
          %220 = sbr.rel (%p218) target = $region36
        $region35: #{tpu_custom_call.1} parent=31 // pred_region
          %221 = dma.done %s214, 64
        $region36: #{tpu_custom_call.1} parent=31 // pred_fallthru
          _
        // Predicated region
        $region37: #{tpu_custom_call.1} parent=31 // pred_check
          %p222 = pneg %p91
        $region38: #{tpu_custom_call.1} parent=31 // pred_check_branch
          %224 = sbr.rel (%p222) target = $region40
        $region39: #{tpu_custom_call.1} parent=31 // pred_region
          %225 = dma.done [#allocation7], 256
        $region40: #{tpu_custom_call.1} parent=31 // pred_fallthru
          _
        %s226 = sand.u32 %s50, 1
        %s227 = scalar_lea.sflag [#allocation4], %s226
        %s228 = sand.u32 %s50, 1
        %s229 = smul.addr %s228, 4
        %s230 = scalar_lea.vmem [#allocation3], %s229
        %p231 = pneg %p63
        %p232 = pneg %p60
        %p233 = pneg %p91
        %p234 = pneg %p88
        %p235 = scmp.lt.s32.totalorder %s27, 0
        %s236 = scalar_select %p235, %s27, 0
        %s237 = scalar_lea.vmem %s2, %s236
        %p238 = pneg %p117
        %p239 = pneg %p114
        %p240 = pneg %p145
        %p241 = pneg %p142
        %s242 = sand.u32 %s132, 1
        %s243 = scalar_lea.sflag [#allocation5], %s242
        %s244 = sand.u32 %s132, 1
        %s245 = smul.addr %s244, 8
        %s246 = scalar_lea.vmem [#allocation8], %s245
        %s247 = smul.u32 4, %s28
        %p248 = scmp.lt.s32.totalorder %s27, 0
        %s249 = scalar_select %p248, %s27, 0
        %s250 = scalar_lea.vmem %s2, %s249
        %p252 = scmp.eq.s32.totalorder %s28, 0
        // Predicated region
        $region41: #{tpu_custom_call.1} parent=31 // pred_check
          %p253 = pneg %p252
        $region42: #{tpu_custom_call.1} parent=31 // pred_check_branch
          %255 = sbr.rel (%p253) target = $region44
        $region43: #{tpu_custom_call.1} parent=31 // pred_region
          %vm256 = vcmask 523264
          %257 = vst.msk [vmem:[#allocation2] sm:$0xff] %vm256, 0.0
        $region44: #{tpu_custom_call.1} parent=31 // pred_fallthru
          _
        %v258 = vld [vmem:[#allocation2] sm:$0xff]
        %v259 = vld [vmem:[%s217] sm:$0xf]
        %v260 = vld [vmem:[#allocation6] sm:$0xf]
        %v261 = vld [vmem:[#allocation6 + $0x4] sm:$0xf]
        %v262 = vld [vmem:[#allocation6 + $0x8] sm:$0xf]
        %v263 = vld [vmem:[#allocation6 + $0xc] sm:$0xf]
        %v268 = vunpack.c.l.b16 %v260
        %v269 = vunpack.c.l.b16 %v261
        %v270 = vunpack.c.l.b16 %v262
        %v271 = vunpack.c.l.b16 %v263
        %v272 = vpack.c.b16 %v269, %v268
        %v273 = vpack.c.b16 %v271, %v270
        %vm276 = vcmask 261120
        %v278 = vsel %vm276, %v259, 0
        %280 = vmatprep.subr.bf16.mxu0 0
        %281 = vmatpush1.bf16.msra.mxu0 %v272
        %282 = vmatprep.subr.bf16.mxu0 0
        %283 = vmatpush1.bf16.msra.mxu0 %v273
        %284 = vmatprep.subr.bf16.mxu0 0
        %285 = vmatpush1.bf16.msra.mxu0 0
        %286 = vmatprep.subr.bf16.mxu0 0
        %287 = vmatpush1.bf16.msra.mxu0 0
        %288 = vmatprep.subr.bf16.mxu0 0
        %289 = vmatpush1.bf16.msra.mxu0 0
        %290 = vmatprep.subr.bf16.mxu0 0
        %291 = vmatpush1.bf16.msra.mxu0 0
        %292 = vmatprep.subr.bf16.mxu0 0
        %293 = vmatpush1.bf16.msra.mxu0 0
        %294 = vmatprep.subr.bf16.mxu0 0
        %295 = vmatpush1.bf16.msra.mxu0 0
        %296 = vmatprep.subr.bf16.mxu0 0
        %297 = vmatpush1.bf16.msra.mxu0 0
        %298 = vmatprep.subr.bf16.mxu0 0
        %299 = vmatpush1.bf16.msra.mxu0 0
        %300 = vmatprep.subr.bf16.mxu0 0
        %301 = vmatpush1.bf16.msra.mxu0 0
        %302 = vmatprep.subr.bf16.mxu0 0
        %303 = vmatpush1.bf16.msra.mxu0 0
        %304 = vmatprep.subr.bf16.mxu0 0
        %305 = vmatpush1.bf16.msra.mxu0 0
        %306 = vmatprep.subr.bf16.mxu0 0
        %307 = vmatpush1.bf16.msra.mxu0 0
        %308 = vmatprep.subr.bf16.mxu0 0
        %309 = vmatpush1.bf16.msra.mxu0 0
        %310 = vmatprep.subr.bf16.mxu0 0
        %311 = vmatpush1.bf16.msra.mxu0 0
        %312 = vmatprep.mubr.bf16.mxu0 0
        %313 = vmatmul.mubr.bf16.gmra.mrb[0].mxu0 %v278
        %v314 = vpop.f32.mrb[0].mxu0
        %v315 = vadd.f32 0.0, %v314
        %v316 = vpop.f32.mrb[0].mxu0
        %v317 = vpop.f32.mrb[0].mxu0
        %v318 = vpop.f32.mrb[0].mxu0
        %319 = vdwg.mxu0
        %v320 = vadd.f32 %v258, %v315
        %vm321 = vcmask 523264
        %322 = vst.msk [vmem:[#allocation2] sm:$0xff] %vm321, %v320
        // Predicated region
        $region45: #{tpu_custom_call.1} parent=31 // pred_check
          %p323 = pneg %p252
        $region46: #{tpu_custom_call.1} parent=31 // pred_check_branch
          %325 = sbr.rel (%p323) target = $region48
        $region47: #{tpu_custom_call.1} parent=31 // pred_region
          %v326 = vld [vmem:[#allocation2] sm:$0xff]
          %v327 = vld [vmem:[%s250] sm:$0x1]
          %v329 = vlaneseq
          %v330 = vshrl.u32 %v329, 7
          %v331 = vsub.s32 0, %v330
          %v332 = vrot.slane %v327, %v331
          %v334 = vadd.f32 %v326, %v332
          %335 = vst.msk [vmem:[%s246] sm:$0xff] %vm321, %v334
        $region48: #{tpu_custom_call.1} parent=31 // pred_fallthru
          _
        %s336 = sand.u32 %s132, 1
        %s337 = scalar_lea.sflag [#allocation5], %s336
        %s338 = sand.u32 %s132, 1
        %s339 = smul.addr %s338, 8
        %s340 = scalar_lea.vmem [#allocation8], %s339
        // Predicated region
        $region49: #{tpu_custom_call.1} parent=31 // pred_check
          %p341 = pneg %p142
        $region50: #{tpu_custom_call.1} parent=31 // pred_check_branch
          %343 = sbr.rel (%p341) target = $region52
        $region51: #{tpu_custom_call.1} parent=31 // pred_region
          %s345 = ssub.s32 128, 128
          %346 = vsyncadd %s337, %s345
          %s347 = sadd.s32 %s27, %s26
          %s348 = smul.addr %s347, 128
          %s349 = scalar_lea.hbm %s3, %s348
          %s351 = sshll.u32 %s340, 4
          %s352 = int_to_ptr.vmem [resolvable:$true] %s351
          %354 = dma.vmem_to_hbm [thread:$0]  %s352, 128, %s349, %s337
        $region52: #{tpu_custom_call.1} parent=31 // pred_fallthru
          _
      $region32: #{tpu_custom_call.1} parent=5 // pred_fallthru
        _
      %p355 = scmp.le.s32.totalorder 2, %s16
      // Predicated region
      $region53: #{tpu_custom_call.1} parent=5 // pred_check
        %p356 = pneg %p355
      $region54: #{tpu_custom_call.1} parent=5 // pred_check_branch
        %358 = sbr.rel (%p356) target = $region56
      $region55: #{tpu_custom_call.1} parent=5 // pred_region
        %s359 = ssub.s32 %s16, 2
        // Predicated region
        $region57: #{tpu_custom_call.1} parent=55 // pred_check
          %p360 = pneg %p148
        $region58: #{tpu_custom_call.1} parent=55 // pred_check_branch
          %362 = sbr.rel (%p360) target = $region60
        $region59: #{tpu_custom_call.1} parent=55 // pred_region
          %s363 = sand.u32 %s133, 1
          %s364 = scalar_lea.sflag [#allocation5], %s363
          %s365 = sand.u32 %s133, 1
          %s366 = smul.addr %s365, 8
          %s367 = scalar_lea.vmem [#allocation8], %s366
          %368 = dma.done %s364, 128
        $region60: #{tpu_custom_call.1} parent=55 // pred_fallthru
          _
      $region56: #{tpu_custom_call.1} parent=5 // pred_fallthru
        _
    $region6: #{tpu_custom_call.1} parent=1 // loop_footer
      %s20 = sadd.s32 1, %s16
    $region7: #{tpu_custom_call.1} parent=1 // loop_footer_branch
      %15 = sbr.rel target = $region3
    $region8: #{tpu_custom_call.1} parent=1 // loop_exit
      _
    %369 = vsyncpa [#allocation4], 1
    %s370 = scalar_lea.sflag [#allocation4], 1
    %371 = vsyncpa %s370, 1
    %372 = vsyncpa [#allocation7], 1
    %373 = vsyncpa [#allocation5], 1
    %s374 = scalar_lea.sflag [#allocation5], 1
    %375 = vsyncpa %s374, 1

</llo_original>
